<compile_context>
chip_gen: v7x
topology: tpu7x:2x2x1
jax: 0.10.0
libtpu: 0.0.40
codegen_flags: <defaults>
</compile_context>

<pallas_src>
import jax
import jax.numpy as jnp
from jax.experimental import pallas as pl
from jax.experimental.pallas import tpu as pltpu


def attention_layer_kernel(x_ref, w_ref, ctx_ref, wts_ref):
    # x_ref: (TB, S, F) VMEM   w_ref: (1, F) VMEM
    # ctx_ref: (TB, F) VMEM    wts_ref: (TB, S) VMEM (lane-dense weights)
    x = x_ref[...]                                              # [TB, S, F]
    w = w_ref[...]                                              # [1, F]

    # Linear(F -> 1) without bias (softmax over S is shift-invariant, so the
    # bias cannot affect either output). Lane-dense result: [TB, S].
    scores = jnp.sum(x * w, axis=-1)                            # [TB, S]

    # softmax over the sequence axis (dim=1 of the reference [B, S, 1]),
    # done entirely in the lane-dense [TB, S] layout.
    m = jnp.max(scores, axis=-1, keepdims=True)                 # [TB, 1]
    e = jnp.exp(scores - m)                                     # [TB, S]
    denom = jnp.sum(e, axis=-1, keepdims=True)                  # [TB, 1]
    weights = e * pl.reciprocal(denom, approx=False)            # [TB, S]

    # context = sum_s x[b, s, :] * weights[b, s]; expand only here.
    ctx = jnp.sum(x * weights[:, :, None], axis=1)              # [TB, F]

    ctx_ref[...] = ctx.astype(ctx_ref.dtype)
    wts_ref[...] = weights.astype(wts_ref.dtype)                # lane-dense store


def _round_up(v, m):
    return ((v + m - 1) // m) * m


def _is_multi_tensorcore_chip():
    # v7x has 2 TensorCores per chip; v5e/v6e have 1.
    try:
        kind = jax.devices()[0].device_kind.lower()
        return "v7" in kind
    except Exception:
        return False


def attention_layer(x, w, b=None):
    """x: [B, S, F], w: [1, F] (nn.Linear weight), b: [1, 1] (bias, unused —
    softmax over S is invariant to a scalar shift, see kernel comment).

    Returns (context [B, F], attention_weights [B, S, 1])."""
    del b  # mathematically a no-op for both outputs
    B, S, F = x.shape
    itemsize = x.dtype.itemsize

    # dtype-dependent sublane multiple: 8 (f32), 16 (bf16), 32 (int8/fp8)
    sub = max(8, 32 // itemsize)

    multi_tc = _is_multi_tensorcore_chip()

    # --- pick batch-tile size from the PADDED VMEM footprint of one batch row
    padded_batch_bytes = _round_up(S, sub) * _round_up(F, 128) * itemsize
    target_block_bytes = (8 if multi_tc else 4) * 1024 * 1024
    TB = int(min(B, max(1, target_block_bytes // padded_batch_bytes)))
    if TB < B:
        TB = max(sub, (TB // sub) * sub)    # keep [TB, *] out blocks (8,128)-legal
    num_blocks = int(pl.cdiv(B, TB))
    if multi_tc and num_blocks > 1 and num_blocks % 2 == 1:
        num_blocks += 1                     # even block count -> both v7x TCs busy
    B_pad = num_blocks * TB
    if B_pad != B:
        x = jnp.pad(x, ((0, B_pad - B), (0, 0), (0, 0)))  # zero rows: sliced off below

    # --- VMEM budget from padded shapes: 2x double-buffered input, 2x outputs,
    #     ~2 input blocks of elementwise temporaries (x*w, x*weights), + slack.
    in_block = TB * padded_batch_bytes
    out_ctx_block = _round_up(TB, sub) * _round_up(F, 128) * itemsize
    out_wts_block = _round_up(TB, sub) * _round_up(S, 128) * itemsize
    vmem_limit = 4 * in_block + 2 * (out_ctx_block + out_wts_block) + (2 << 20)
    vmem_limit = int(min(max(vmem_limit, 4 << 20), 48 << 20))  # safe on v7x's 64 MiB

    ctx, wts = pl.pallas_call(
        attention_layer_kernel,
        out_shape=(
            jax.ShapeDtypeStruct((B_pad, F), x.dtype),     # context
            jax.ShapeDtypeStruct((B_pad, S), x.dtype),     # weights (lane-dense)
        ),
        grid=(num_blocks,),
        in_specs=[
            pl.BlockSpec((TB, S, F), lambda i: (i, 0, 0)),             # x batch tile
            pl.BlockSpec((1, F), lambda i: (0, 0)),                    # weight (shared)
        ],
        out_specs=(
            pl.BlockSpec((TB, F), lambda i: (i, 0)),                   # context rows
            pl.BlockSpec((TB, S), lambda i: (i, 0)),                   # weights rows
        ),
        compiler_params=pltpu.CompilerParams(
            dimension_semantics=("parallel",),
            vmem_limit_bytes=vmem_limit,
        ),
    )(x, w)

    # layout plumbing back to the reference shapes
    return ctx[:B], wts[:B, :, None]


if __name__ == "__main__":
    B, S, F = 2, 8, 32
    key = jax.random.PRNGKey(0)
    kx, kw, kb = jax.random.split(key, 3)

    x = jax.random.normal(kx, (B, S, F), dtype=jnp.float32)
    # deterministic "Linear(F, 1)" params (scaled like PyTorch's default init range)
    w = jax.random.uniform(kw, (1, F), jnp.float32, -1.0, 1.0) / jnp.sqrt(F)
    b = jax.random.uniform(kb, (1, 1), jnp.float32, -1.0, 1.0) / jnp.sqrt(F)

    ctx, wts = attention_layer(x, w, b)
    jax.block_until_ready((ctx, wts))

    # pure-JAX reference check (reference INCLUDES the bias; the kernel drops it
    # because softmax over S is shift-invariant — results must still match)
    ref_scores = jnp.einsum("bsf,f->bs", x, w[0])[..., None] + b[0, 0]   # [B,S,1]
    ref_wts = jax.nn.softmax(ref_scores, axis=1)
    ref_ctx = jnp.sum(x * ref_wts, axis=1)

    assert ctx.shape == (B, F) and wts.shape == (B, S, 1)
    assert jnp.allclose(ctx, ref_ctx, rtol=1e-3, atol=1e-3)
    assert jnp.allclose(wts, ref_wts, rtol=1e-3, atol=1e-3)

    print("KERNEL_OK")
</pallas_src>

<mosaic_0001>
module attributes {stable_mosaic.version = 11 : i64} {
  func.func @attention_layer_kernel(%arg0: i32, %arg1: memref<2x8x32xf32, #tpu.memory_space<vmem>>, %arg2: memref<1x32xf32, #tpu.memory_space<vmem>>, %arg3: memref<2x32xf32, #tpu.memory_space<vmem>>, %arg4: memref<2x8xf32, #tpu.memory_space<vmem>>) attributes {dimension_semantics = [#tpu.dimension_semantics<parallel>], iteration_bounds = array<i64: 1>, scalar_prefetch = 0 : i64, scratch_operands = 0 : i64, tpu.core_type = #tpu.core_type<tc>, window_params = [{transform_indices = @transform_0, window_bounds = array<i64: 2, 8, 32>}, {pipeline_mode = #tpu.pipeline_mode<synchronous>, transform_indices = @transform_1, window_bounds = array<i64: 1, 32>}, {transform_indices = @transform_2, window_bounds = array<i64: 2, 32>}, {transform_indices = @transform_3, window_bounds = array<i64: 2, 8>}]} {
    %c0 = arith.constant 0 : index
    %c0_0 = arith.constant 0 : index
    %c0_1 = arith.constant 0 : index
    %0 = vector.load %arg1[%c0, %c0_0, %c0_1] : memref<2x8x32xf32, #tpu.memory_space<vmem>>, vector<2x8x32xf32>
    %c0_2 = arith.constant 0 : index
    %c0_3 = arith.constant 0 : index
    %1 = vector.load %arg2[%c0_2, %c0_3] : memref<1x32xf32, #tpu.memory_space<vmem>>, vector<1x32xf32>
    %2 = vector.shape_cast %1 : vector<1x32xf32> to vector<1x1x32xf32>
    %3 = vector.broadcast %2 : vector<1x1x32xf32> to vector<2x8x32xf32>
    %4 = arith.mulf %0, %3 : vector<2x8x32xf32>
    %cst = arith.constant dense<0.000000e+00> : vector<2x8xf32>
    %5 = vector.multi_reduction <add>, %4, %cst [2] : vector<2x8x32xf32> to vector<2x8xf32>
    %cst_4 = arith.constant dense<0xFF800000> : vector<2xf32>
    %6 = vector.multi_reduction <maximumf>, %5, %cst_4 [1] : vector<2x8xf32> to vector<2xf32>
    %7 = vector.shape_cast %6 : vector<2xf32> to vector<2x1xf32>
    %8 = vector.broadcast %7 : vector<2x1xf32> to vector<2x8xf32>
    %9 = arith.subf %5, %8 : vector<2x8xf32>
    %10 = math.exp %9 : vector<2x8xf32>
    %cst_5 = arith.constant dense<0.000000e+00> : vector<2xf32>
    %11 = vector.multi_reduction <add>, %10, %cst_5 [1] : vector<2x8xf32> to vector<2xf32>
    %12 = vector.shape_cast %11 : vector<2xf32> to vector<2x1xf32>
    %13 = tpu.reciprocal %12 : vector<2x1xf32> -> vector<2x1xf32>
    %14 = vector.broadcast %13 : vector<2x1xf32> to vector<2x8xf32>
    %15 = arith.mulf %10, %14 : vector<2x8xf32>
    %16 = vector.shape_cast %15 : vector<2x8xf32> to vector<2x8x1xf32>
    %17 = vector.broadcast %16 : vector<2x8x1xf32> to vector<2x8x32xf32>
    %18 = arith.mulf %0, %17 : vector<2x8x32xf32>
    %cst_6 = arith.constant dense<0.000000e+00> : vector<2x32xf32>
    %19 = vector.multi_reduction <add>, %18, %cst_6 [1] : vector<2x8x32xf32> to vector<2x32xf32>
    %c0_7 = arith.constant 0 : index
    %c0_8 = arith.constant 0 : index
    %20 = vector.load %arg3[%c0_7, %c0_8] : memref<2x32xf32, #tpu.memory_space<vmem>>, vector<2x32xf32>
    tpu.vector_store %arg3[%c0_7, %c0_8], %19 {strides = array<i32>} : memref<2x32xf32, #tpu.memory_space<vmem>>, vector<2x32xf32>,
    %c0_9 = arith.constant 0 : index
    %c0_10 = arith.constant 0 : index
    %21 = vector.load %arg4[%c0_9, %c0_10] : memref<2x8xf32, #tpu.memory_space<vmem>>, vector<2x8xf32>
    tpu.vector_store %arg4[%c0_9, %c0_10], %15 {strides = array<i32>} : memref<2x8xf32, #tpu.memory_space<vmem>>, vector<2x8xf32>,
    return
  }
  func.func @transform_0(%arg0: i32) -> (i32, i32, i32) {
    %c0_i32 = arith.constant 0 : i32
    %c0_i32_0 = arith.constant 0 : i32
    %c0_i32_1 = arith.constant 0 : i32
    return %arg0, %c0_i32, %c0_i32_0 : i32, i32, i32
  }
  func.func @transform_1(%arg0: i32) -> (i32, i32) {
    %c0_i32 = arith.constant 0 : i32
    %c0_i32_0 = arith.constant 0 : i32
    %c0_i32_1 = arith.constant 0 : i32
    return %c0_i32, %c0_i32_0 : i32, i32
  }
  func.func @transform_2(%arg0: i32) -> (i32, i32) {
    %c0_i32 = arith.constant 0 : i32
    %c0_i32_0 = arith.constant 0 : i32
    return %arg0, %c0_i32 : i32, i32
  }
  func.func @transform_3(%arg0: i32) -> (i32, i32) {
    %c0_i32 = arith.constant 0 : i32
    %c0_i32_0 = arith.constant 0 : i32
    return %arg0, %c0_i32 : i32, i32
  }
}

</mosaic_0001>

<llo_original>
// kernel: tpu_custom_call.1
$region0: #{tpu_custom_call.1}
  #allocation0 [shape = 'u32[]', space=smem, size = 0x4, offset = 0x4, fixed_abs, tag = 'smem constant byte address 0x4 - core index']
  #allocation1 [shape = 'u32[144,128]{1,0:T(1,128)}', space=vmem, size = 0x12000, scoped, tag = 'internal scratch']
  %s0 = inlined_call_operand.hbm [shape: f32[2,8,32], index: 0, kind: input, shape index: {}]
  %s1 = inlined_call_operand.vmem [shape: f32[1,32], index: 1, kind: input, shape index: {}]
  %s2 = inlined_call_operand.hbm [shape: f32[2,32], index: 2, kind: output, shape index: {0}]
  %s3 = inlined_call_operand.hbm [shape: f32[2,8], index: 3, kind: output, shape index: {1}]
  %4 = xla_tuple %s2, %s3
  %s5 = sld [smem:[#allocation0]]
  $region30: #{tpu_custom_call.1} parent=0
    _
  %s7 = ssub.s32 1, %s5
  %s8 = scalar_select 0, %s7, %s5
  $region1: #{tpu_custom_call.1} parent=0
    #allocation2 [shape = 'u8[8192]{0}', space=vmem, size = 0x2000, scoped, tag = 'input window, operand 0, single buffered']
    #allocation3 [shape = 's32[1]{0}', space=sflag, size = 0x4, scoped, tag = 'scoped memory for tpu_custom_call.1']
    #allocation4 [shape = 's32[1]{0}', space=sflag, size = 0x4, scoped, tag = 'scoped memory for tpu_custom_call.1']
    #allocation5 [shape = 'u8[1024]{0}', space=vmem, size = 0x400, scoped, tag = 'output window, operand 0, single buffered']
    #allocation6 [shape = 'u8[1024]{0}', space=vmem, size = 0x400, scoped, tag = 'output window, operand 1, single buffered']
    #allocation7 [shape = 's32[1]{0}', space=sflag, size = 0x4, scoped, tag = 'scoped memory for tpu_custom_call.1']
    %9 = vsyncpa [#allocation3], 0
    %10 = vsyncpa [#allocation4], 0
    %11 = vsyncpa [#allocation7], 0
    // Predicated region
    $region2: #{tpu_custom_call.1} parent=1 // pred_check
      _
    $region3: #{tpu_custom_call.1} parent=1 // pred_check_branch
      %13 = sbr.rel (0) target = $region5
    $region4: #{tpu_custom_call.1} parent=1 // pred_region
      %s15 = ssub.s32 256, 256
      %16 = vsyncadd [#allocation3], %s15
      %s17 = sshll.u32 [#allocation2], 4
      %s18 = int_to_ptr.vmem [resolvable:$true] %s17
      %23 = dma.hbm_to_vmem [thread:$0]  %s0, 256, %s18, [#allocation3], 128, 128, 8
    $region5: #{tpu_custom_call.1} parent=1 // pred_fallthru
      _
    // Predicated region
    $region6: #{tpu_custom_call.1} parent=1 // pred_check
      _
    $region7: #{tpu_custom_call.1} parent=1 // pred_check_branch
      %25 = sbr.rel (0) target = $region9
    $region8: #{tpu_custom_call.1} parent=1 // pred_region
      _
    $region9: #{tpu_custom_call.1} parent=1 // pred_fallthru
      _
    // Predicated region
    $region10: #{tpu_custom_call.1} parent=1 // pred_check
      _
    $region11: #{tpu_custom_call.1} parent=1 // pred_check_branch
      %27 = sbr.rel (0) target = $region13
    $region12: #{tpu_custom_call.1} parent=1 // pred_region
      %28 = dma.done [#allocation3], 256
    $region13: #{tpu_custom_call.1} parent=1 // pred_fallthru
      _
    %v29 = vld [vmem:[#allocation2] sm:$0xff]
    %v30 = vld [vmem:[#allocation2 + $0x8] sm:$0xff]
    %v31 = vld [vmem:[%s1] sm:$0x1]
    %v33 = vlaneseq
    %v34 = vshrl.u32 %v33, 7
    %v35 = vsub.s32 0, %v34
    %v36 = vrot.slane %v31, %v35
    %v38 = vmul.f32 %v29, %v36
    %v39 = vmul.f32 %v30, %v36
    %vm40 = vcmask 261120
    %v41 = vsel %vm40, %v38, 0.0
    %42 = vadd.xlane.f32.xlu0 %v41
    %v43 = vpop.xlane.xlu0 %42
    %v44 = vsel %vm40, %v39, 0.0
    %45 = vadd.xlane.f32.xlu0 %v44
    %v46 = vpop.xlane.xlu0 %45
    %v49 = vlaneseq
    %v50 = vand.u32 %v49, 127
    %v51 = vlaneseq
    %v52 = vshrl.u32 %v51, 7
    %v53 = vsub.s32 %v50, %v52
    %v54 = vrot.slane %v43, %v53
    %v55 = vlaneseq
    %v56 = vshrl.u32 %v55, 7
    %v57 = vsub.s32 %v50, %v56
    %v58 = vrot.slane %v46, %v57
    %vm59 = vcmask 1041409
    %v60 = vsel %vm59, %v58, %v54
    %vm62 = vcmask 58368
    %v63 = vsel %vm62, %v60, -inf
    %64 = vmax.xlane.f32.xlu0 %v63
    %v65 = vpop.xlane.xlu0 %64
    %v67 = vlaneseq
    %v68 = vshrl.u32 %v67, 7
    %v69 = vsub.s32 0, %v68
    %v70 = vrot.slane %v65, %v69
    %v71 = vlaneseq
    %v72 = vshrl.u32 %v71, 7
    %v73 = vsub.s32 1, %v72
    %v74 = vrot.slane %v65, %v73
    %v77 = vsub.f32 %v43, %v70
    %v78 = vsub.f32 %v46, %v74
    %v79 = vmul.f32 %v77, 1.442695
    %v80 = vpow.pop %v79
    %v81 = vmul.f32 %v78, 1.442695
    %v82 = vpow.pop %v81
    %85 = vset.pattern.permute.xlu0 0
    %86 = vperm.xlu0 %85, %v80
    %v87 = vpop.permute.xlu0 %86
    %88 = vset.pattern.permute.xlu0 0
    %89 = vperm.xlu0 %88, %v82
    %v90 = vpop.permute.xlu0 %89
    %v91 = vlaneseq
    %v92 = vshrl.u32 %v91, 7
    %v93 = vsub.s32 %v50, %v92
    %v94 = vrot.slane %v87, %v93
    %v95 = vlaneseq
    %v96 = vshrl.u32 %v95, 7
    %v97 = vsub.s32 %v50, %v96
    %v98 = vrot.slane %v90, %v97
    %v99 = vsel %vm59, %v98, %v94
    %v101 = vsel %vm62, %v99, 0.0
    %102 = vadd.xlane.f32.xlu0 %v101
    %v103 = vpop.xlane.xlu0 %102
    %v104 = vrcp.pop %v103
    %v106 = vlaneseq
    %v107 = vshrl.u32 %v106, 7
    %v108 = vsub.s32 0, %v107
    %v109 = vrot.slane %v104, %v108
    %v110 = vlaneseq
    %v111 = vshrl.u32 %v110, 7
    %v112 = vsub.s32 1, %v111
    %v113 = vrot.slane %v104, %v112
    %v116 = vmul.f32 %v80, %v109
    %v117 = vmul.f32 %v82, %v113
    %119 = vset.pattern.permute.xlu0 0
    %120 = vperm.xlu0 %119, %v116
    %v121 = vpop.permute.xlu0 %120
    %124 = vset.pattern.permute.xlu0 0
    %125 = vperm.xlu0 %124, %v117
    %v126 = vpop.permute.xlu0 %125
    %v128 = vmul.f32 %v29, %v121
    %v129 = vmul.f32 %v30, %v126
    %v130 = vsel %vm40, %v128, 0.0
    %v131 = vrot.slane %v130, 4
    %v132 = vadd.f32 %v130, %v131
    %v133 = vrot.slane %v132, 2
    %v134 = vadd.f32 %v132, %v133
    %v135 = vrot.slane %v134, 1
    %v136 = vadd.f32 %v134, %v135
    %v137 = vsel %vm40, %v129, 0.0
    %v138 = vrot.slane %v137, 4
    %v139 = vadd.f32 %v137, %v138
    %v140 = vrot.slane %v139, 2
    %v141 = vadd.f32 %v139, %v140
    %v142 = vrot.slane %v141, 1
    %v143 = vadd.f32 %v141, %v142
    %v146 = vsel %vm59, %v143, %v136
    %vm148 = vcmask 254976
    %149 = vst.msk [vmem:[#allocation5] sm:$0x3] %vm148, %v146
    %v150 = vlaneseq
    %v151 = vshrl.u32 %v150, 7
    %v152 = vsub.s32 %v50, %v151
    %v153 = vrot.slane %v121, %v152
    %v154 = vlaneseq
    %v155 = vshrl.u32 %v154, 7
    %v156 = vsub.s32 %v50, %v155
    %v157 = vrot.slane %v126, %v156
    %v158 = vsel %vm59, %v157, %v153
    %160 = vst.msk [vmem:[#allocation6] sm:$0x3] %vm62, %v158
    // Predicated region
    $region14: #{tpu_custom_call.1} parent=1 // pred_check
      _
    $region15: #{tpu_custom_call.1} parent=1 // pred_check_branch
      %162 = sbr.rel (0) target = $region17
    $region16: #{tpu_custom_call.1} parent=1 // pred_region
      %s164 = ssub.s32 32, 32
      %165 = vsyncadd [#allocation4], %s164
      %s167 = sshll.u32 [#allocation5], 4
      %s168 = int_to_ptr.vmem [resolvable:$true] %s167
      %170 = dma.vmem_to_hbm [thread:$0]  %s168, 32, %s2, [#allocation4]
    $region17: #{tpu_custom_call.1} parent=1 // pred_fallthru
      _
    // Predicated region
    $region18: #{tpu_custom_call.1} parent=1 // pred_check
      _
    $region19: #{tpu_custom_call.1} parent=1 // pred_check_branch
      %172 = sbr.rel (0) target = $region21
    $region20: #{tpu_custom_call.1} parent=1 // pred_region
      %s174 = ssub.s32 32, 32
      %175 = vsyncadd [#allocation7], %s174
      %s177 = sshll.u32 [#allocation6], 4
      %s178 = int_to_ptr.vmem [resolvable:$true] %s177
      %180 = dma.vmem_to_hbm [thread:$0]  %s178, 32, %s3, [#allocation7]
    $region21: #{tpu_custom_call.1} parent=1 // pred_fallthru
      _
    // Predicated region
    $region22: #{tpu_custom_call.1} parent=1 // pred_check
      _
    $region23: #{tpu_custom_call.1} parent=1 // pred_check_branch
      %182 = sbr.rel (0) target = $region25
    $region24: #{tpu_custom_call.1} parent=1 // pred_region
      %183 = dma.done [#allocation4], 32
    $region25: #{tpu_custom_call.1} parent=1 // pred_fallthru
      _
    // Predicated region
    $region26: #{tpu_custom_call.1} parent=1 // pred_check
      _
    $region27: #{tpu_custom_call.1} parent=1 // pred_check_branch
      %185 = sbr.rel (0) target = $region29
    $region28: #{tpu_custom_call.1} parent=1 // pred_region
      %186 = dma.done [#allocation7], 32
    $region29: #{tpu_custom_call.1} parent=1 // pred_fallthru
      _
    %187 = vsyncpa [#allocation3], 1
    %188 = vsyncpa [#allocation4], 1
    %189 = vsyncpa [#allocation7], 1

</llo_original>
